<compile_context>
chip_gen: v5e
topology: v5e:2x2
jax: 0.10.0
libtpu: 0.0.40
codegen_flags: <defaults>
</compile_context>

<pallas_src>
import functools

import jax
import jax.numpy as jnp
from jax.experimental import pallas as pl
from jax.experimental.pallas import tpu as pltpu


def _round_up(x, m):
    return ((x + m - 1) // m) * m


def _pick_tile(dim_pad, cap):
    """Largest multiple of 128 that divides dim_pad and is <= cap."""
    t = min(cap, dim_pad)
    while dim_pad % t:
        t -= 128
    return t


def _pick_k_tile(k128):
    """K tile: whole K when it fits; else minimize k-steps (divisor vs pad-to-512)."""
    if k128 <= 1024:
        return k128, k128
    tk_div = _pick_tile(k128, 1024)
    k_pad_512 = _round_up(k128, 512)
    if tk_div >= 256 and (k128 // tk_div) <= (k_pad_512 // 512):
        return tk_div, k128
    return 512, k_pad_512


# ---------------------------------------------------------------------------
# Pallas kernel 1: bf16 matmul + bias + ReLU + fused BatchNorm partial stats
# ---------------------------------------------------------------------------
def _matmul_bias_relu_stats_kernel(a_ref, b_ref, bias_ref, o_ref, sum_ref, sq_ref,
                                   *scratch, apply_relu, nk):
    prod = jnp.dot(a_ref[...], b_ref[...], preferred_element_type=jnp.float32)

    def epilogue(acc):
        r = acc + bias_ref[...]
        if apply_relu:
            r = jnp.maximum(r, 0.0)
        o_ref[...] = r.astype(o_ref.dtype)
        # Per-channel partial sum / sum-of-squares (f32, before the bf16 store);
        # written to sublane row 0 only, zeros elsewhere, so the host-side
        # reduction is a plain contiguous jnp.sum.
        s = jnp.sum(r, axis=0, keepdims=True)
        s2 = jnp.sum(r * r, axis=0, keepdims=True)
        row = jax.lax.broadcasted_iota(jnp.int32, (8, r.shape[1]), 0)
        sum_ref[...] = jnp.where(row == 0, s, 0.0)
        sq_ref[...] = jnp.where(row == 0, s2, 0.0)

    if nk == 1:
        # Single K step: no scratch accumulator round-trip at all.
        epilogue(prod)
    else:
        acc_ref, = scratch
        k = pl.program_id(2)  # top-level only (safe for interpret + Mosaic)

        @pl.when(k == 0)
        def _():
            acc_ref[...] = prod          # write, not zero-init + add

        @pl.when(k != 0)
        def _():
            acc_ref[...] += prod

        @pl.when(k == nk - 1)
        def _():
            epilogue(acc_ref[...])


def matmul_bias_relu_stats(a, b, bias, apply_relu=True):
    """a: (M, K), b: (K, N), bias: (N,).

    Returns (out (M_pad, N_pad) bf16, channel-sum partials (gm*8, N_pad) f32,
    channel-sumsq partials (gm*8, N_pad) f32, M_pad, N_pad).
    """
    M, K = a.shape
    Kb, N = b.shape
    assert K == Kb
    M_pad = _round_up(M, 128)
    N128 = _round_up(N, 128)
    K128 = _round_up(K, 128)

    tm = _pick_tile(M_pad, 512)
    # Keep the output tile lane-wide (>=256) for the 256-wide MXU where possible.
    tn, N_pad = _pick_tile(N128, 512), N128
    if tn < 256 and N128 > 256:
        tn, N_pad = 256, _round_up(N, 256)
    tk, K_pad = _pick_k_tile(K128)

    gm, gn, gk = M_pad // tm, N_pad // tn, K_pad // tk

    # Pad + bf16 cast in one shot (jnp.pad fuses with the cast).
    a = jnp.pad(a.astype(jnp.bfloat16), ((0, M_pad - M), (0, K_pad - K)))
    b = jnp.pad(b.astype(jnp.bfloat16), ((0, K_pad - K), (0, N_pad - N)))
    bias_p = jnp.pad(bias.astype(jnp.float32), (0, N_pad - N)).reshape(1, N_pad)

    kern = functools.partial(_matmul_bias_relu_stats_kernel,
                             apply_relu=apply_relu, nk=gk)
    scratch = [] if gk == 1 else [pltpu.VMEM((tm, tn), jnp.float32)]

    out, sums, sqs = pl.pallas_call(
        kern,
        out_shape=(
            jax.ShapeDtypeStruct((M_pad, N_pad), jnp.bfloat16),
            jax.ShapeDtypeStruct((gm * 8, N_pad), jnp.float32),
            jax.ShapeDtypeStruct((gm * 8, N_pad), jnp.float32),
        ),
        grid_spec=pltpu.PrefetchScalarGridSpec(
            num_scalar_prefetch=0,
            grid=(gm, gn, gk),
            in_specs=[
                pl.BlockSpec((tm, tk), lambda i, j, k: (i, k)),
                pl.BlockSpec((tk, tn), lambda i, j, k: (k, j)),
                pl.BlockSpec((1, tn), lambda i, j, k: (0, j)),
            ],
            out_specs=(
                pl.BlockSpec((tm, tn), lambda i, j, k: (i, j)),
                pl.BlockSpec((8, tn), lambda i, j, k: (i, j)),
                pl.BlockSpec((8, tn), lambda i, j, k: (i, j)),
            ),
            scratch_shapes=scratch,
        ),
        compiler_params=pltpu.CompilerParams(
            dimension_semantics=("parallel", "parallel", "arbitrary")),
    )(a, b, bias_p)
    return out, sums, sqs, M_pad, N_pad


# ---------------------------------------------------------------------------
# Pallas kernel 2: per-channel BatchNorm affine, bf16 in/out, lane-dense
# ---------------------------------------------------------------------------
def _bn_affine_kernel(x_ref, scale_ref, shift_ref, o_ref):
    o_ref[...] = (x_ref[...].astype(jnp.float32) * scale_ref[...]
                  + shift_ref[...]).astype(o_ref.dtype)


def bn_affine(x, scale, shift):
    """x: (M, C) bf16 with M, C multiples of 128; scale/shift: (C,) f32."""
    M, C = x.shape
    # ~4 MiB bf16 tiles (HBM-bound pass); output aliases the input buffer.
    cap = max(128, min(M, (4 * 1024 * 1024 // (2 * C)) // 128 * 128))
    tm = _pick_tile(M, cap)
    return pl.pallas_call(
        _bn_affine_kernel,
        out_shape=jax.ShapeDtypeStruct((M, C), x.dtype),
        grid_spec=pltpu.PrefetchScalarGridSpec(
            num_scalar_prefetch=0,
            grid=(M // tm,),
            in_specs=[
                pl.BlockSpec((tm, C), lambda i: (i, 0)),
                pl.BlockSpec((1, C), lambda i: (0, 0)),
                pl.BlockSpec((1, C), lambda i: (0, 0)),
            ],
            out_specs=pl.BlockSpec((tm, C), lambda i: (i, 0)),
        ),
        input_output_aliases={0: 0},
        compiler_params=pltpu.CompilerParams(dimension_semantics=("parallel",)),
    )(x, scale.reshape(1, C), shift.reshape(1, C))


# ---------------------------------------------------------------------------
# Conv + ReLU + BatchNorm block (im2col glue in JAX, hot paths in Pallas)
# ---------------------------------------------------------------------------
def _im2col(x, K, padding):
    # x: (B, H, W, C) bf16 -> (B*OH*OW, K*K*C) bf16 for a stride-1 convolution.
    B, H, W, C = x.shape
    xp = jnp.pad(x, ((0, 0), (padding, padding), (padding, padding), (0, 0)))
    OH = H + 2 * padding - K + 1
    OW = W + 2 * padding - K + 1
    cols = [xp[:, kh:kh + OH, kw:kw + OW, :] for kh in range(K) for kw in range(K)]
    patches = jnp.stack(cols, axis=3)  # (B, OH, OW, K*K, C)
    return patches.reshape(B * OH * OW, K * K * C), OH, OW


def conv_relu_bn_block(x, p, eps=1e-5):
    """Conv2d(3x3, s1, p1) -> ReLU -> BatchNorm2d (training-mode batch stats)."""
    B, H, W, Cin = x.shape
    K = 3
    Cout = p["w"].shape[-1]
    patches, OH, OW = _im2col(x, K, padding=1)
    M = B * OH * OW

    out_pad, sums, sqs, M_pad, N_pad = matmul_bias_relu_stats(
        patches, p["w"].reshape(K * K * Cin, Cout), p["b"], apply_relu=True)

    # Batch statistics from the fused per-block partials. Padded im2col rows
    # are all-zero, so each contributes exactly relu(bias) per channel —
    # subtract that analytically instead of masking inside the kernel.
    pad_rows = M_pad - M
    relu_b = jnp.maximum(p["b"], 0.0)
    sum_c = jnp.sum(sums, axis=0)[:Cout] - pad_rows * relu_b
    sq_c = jnp.sum(sqs, axis=0)[:Cout] - pad_rows * relu_b * relu_b
    mean = sum_c / M
    var = jnp.maximum(sq_c / M - mean * mean, 0.0)  # biased var, as PyTorch uses
    scale = p["gamma"] * jax.lax.rsqrt(var + eps)
    shift = p["beta"] - mean * scale
    scale_p = jnp.pad(scale, (0, N_pad - Cout))
    shift_p = jnp.pad(shift, (0, N_pad - Cout))

    y_pad = bn_affine(out_pad, scale_p, shift_p)  # bf16
    return y_pad[:M, :Cout].reshape(B, OH, OW, Cout)


# ---------------------------------------------------------------------------
# DobuleConv parameters + forward
# ---------------------------------------------------------------------------
def init_params(key, in_channel, out_channel):
    k1, k2, k3, k4 = jax.random.split(key, 4)

    def conv_p(kw, kb, cin, cout):
        bound = 1.0 / ((cin * 9) ** 0.5)
        w = jax.random.uniform(kw, (3, 3, cin, cout), jnp.float32, -bound, bound)
        b = jax.random.uniform(kb, (cout,), jnp.float32, -bound, bound)
        return dict(w=w, b=b,
                    gamma=jnp.ones((cout,), jnp.float32),
                    beta=jnp.zeros((cout,), jnp.float32))

    return dict(conv1=conv_p(k1, k2, in_channel, out_channel),
                conv2=conv_p(k3, k4, out_channel, out_channel))


def double_conv_forward(params, x_nchw):
    x = jnp.transpose(x_nchw, (0, 2, 3, 1)).astype(jnp.bfloat16)  # NCHW -> NHWC
    out = conv_relu_bn_block(x, params["conv1"])
    out = conv_relu_bn_block(out, params["conv2"])
    return jnp.transpose(out, (0, 3, 1, 2)).astype(jnp.float32)   # NHWC -> NCHW


if __name__ == "__main__":
    B, IN_CH, OUT_CH, S = 2, 4, 8, 16
    key = jax.random.PRNGKey(0)
    k_params, k_x = jax.random.split(key)
    params = init_params(k_params, IN_CH, OUT_CH)
    x = jax.random.normal(k_x, (B, IN_CH, S, S), jnp.float32)

    fwd = jax.jit(double_conv_forward)
    y = jax.block_until_ready(fwd(params, x))
    assert y.shape == (B, OUT_CH, S, S), y.shape
    assert bool(jnp.all(jnp.isfinite(y)))
    print("KERNEL_OK")
</pallas_src>

<mosaic_0001>
module attributes {stable_mosaic.version = 11 : i64} {
  func.func @_bn_affine_kernel(%arg0: i32, %arg1: memref<512x128xbf16, #tpu.memory_space<vmem>>, %arg2: memref<1x128xf32, #tpu.memory_space<vmem>>, %arg3: memref<1x128xf32, #tpu.memory_space<vmem>>, %arg4: memref<512x128xbf16, #tpu.memory_space<vmem>>) attributes {dimension_semantics = [#tpu.dimension_semantics<parallel>], iteration_bounds = array<i64: 1>, scalar_prefetch = 0 : i64, scratch_operands = 0 : i64, tpu.core_type = #tpu.core_type<tc>, window_params = [{transform_indices = @transform_0, window_bounds = array<i64: 512, 128>}, {pipeline_mode = #tpu.pipeline_mode<synchronous>, transform_indices = @transform_1, window_bounds = array<i64: 1, 128>}, {pipeline_mode = #tpu.pipeline_mode<synchronous>, transform_indices = @transform_2, window_bounds = array<i64: 1, 128>}, {transform_indices = @transform_3, window_bounds = array<i64: 512, 128>}]} {
    %c0 = arith.constant 0 : index
    %c0_0 = arith.constant 0 : index
    %0 = vector.load %arg1[%c0, %c0_0] : memref<512x128xbf16, #tpu.memory_space<vmem>>, vector<512x128xbf16>
    %1 = arith.extf %0 : vector<512x128xbf16> to vector<512x128xf32>
    %c0_1 = arith.constant 0 : index
    %c0_2 = arith.constant 0 : index
    %2 = vector.load %arg2[%c0_1, %c0_2] : memref<1x128xf32, #tpu.memory_space<vmem>>, vector<1x128xf32>
    %3 = vector.broadcast %2 : vector<1x128xf32> to vector<512x128xf32>
    %4 = arith.mulf %1, %3 : vector<512x128xf32>
    %c0_3 = arith.constant 0 : index
    %c0_4 = arith.constant 0 : index
    %5 = vector.load %arg3[%c0_3, %c0_4] : memref<1x128xf32, #tpu.memory_space<vmem>>, vector<1x128xf32>
    %6 = vector.broadcast %5 : vector<1x128xf32> to vector<512x128xf32>
    %7 = arith.addf %4, %6 : vector<512x128xf32>
    %8 = arith.truncf %7 : vector<512x128xf32> to vector<512x128xbf16>
    %c0_5 = arith.constant 0 : index
    %c0_6 = arith.constant 0 : index
    %9 = vector.load %arg4[%c0_5, %c0_6] : memref<512x128xbf16, #tpu.memory_space<vmem>>, vector<512x128xbf16>
    tpu.vector_store %arg4[%c0_5, %c0_6], %8 {strides = array<i32>} : memref<512x128xbf16, #tpu.memory_space<vmem>>, vector<512x128xbf16>,
    return
  }
  func.func @transform_0(%arg0: i32) -> (i32, i32) {
    %c0_i32 = arith.constant 0 : i32
    %c0_i32_0 = arith.constant 0 : i32
    return %arg0, %c0_i32 : i32, i32
  }
  func.func @transform_1(%arg0: i32) -> (i32, i32) {
    %c0_i32 = arith.constant 0 : i32
    %c0_i32_0 = arith.constant 0 : i32
    %c0_i32_1 = arith.constant 0 : i32
    return %c0_i32, %c0_i32_0 : i32, i32
  }
  func.func @transform_2(%arg0: i32) -> (i32, i32) {
    %c0_i32 = arith.constant 0 : i32
    %c0_i32_0 = arith.constant 0 : i32
    %c0_i32_1 = arith.constant 0 : i32
    return %c0_i32, %c0_i32_0 : i32, i32
  }
  func.func @transform_3(%arg0: i32) -> (i32, i32) {
    %c0_i32 = arith.constant 0 : i32
    %c0_i32_0 = arith.constant 0 : i32
    return %arg0, %c0_i32 : i32, i32
  }
}

module attributes {stable_mosaic.version = 11 : i64} {
  func.func @_matmul_bias_relu_stats_kernel(%arg0: i32, %arg1: i32, %arg2: i32, %arg3: memref<512x128xbf16, #tpu.memory_space<vmem>>, %arg4: memref<128x128xbf16, #tpu.memory_space<vmem>>, %arg5: memref<1x128xf32, #tpu.memory_space<vmem>>, %arg6: memref<512x128xbf16, #tpu.memory_space<vmem>>, %arg7: memref<8x128xf32, #tpu.memory_space<vmem>>, %arg8: memref<8x128xf32, #tpu.memory_space<vmem>>) attributes {dimension_semantics = [#tpu.dimension_semantics<parallel>, #tpu.dimension_semantics<parallel>, #tpu.dimension_semantics<arbitrary>], iteration_bounds = array<i64: 1, 1, 1>, scalar_prefetch = 0 : i64, scratch_operands = 0 : i64, tpu.core_type = #tpu.core_type<tc>, window_params = [{transform_indices = @transform_0, window_bounds = array<i64: 512, 128>}, {transform_indices = @transform_1, window_bounds = array<i64: 128, 128>}, {transform_indices = @transform_2, window_bounds = array<i64: 1, 128>}, {transform_indices = @transform_3, window_bounds = array<i64: 512, 128>}, {transform_indices = @transform_4, window_bounds = array<i64: 8, 128>}, {transform_indices = @transform_5, window_bounds = array<i64: 8, 128>}]} {
    %c0 = arith.constant 0 : index
    %c0_0 = arith.constant 0 : index
    %0 = vector.load %arg3[%c0, %c0_0] : memref<512x128xbf16, #tpu.memory_space<vmem>>, vector<512x128xbf16>
    %c0_1 = arith.constant 0 : index
    %c0_2 = arith.constant 0 : index
    %1 = vector.load %arg4[%c0_1, %c0_2] : memref<128x128xbf16, #tpu.memory_space<vmem>>, vector<128x128xbf16>
    %cst = arith.constant dense<0.000000e+00> : vector<512x128xf32>
    %2 = tpu.matmul %0, %1, %cst {dimension_numbers = #tpu.dot_dimension_numbers<[1], [0], [0], [1], [0, 0, 1, 1], [], []>} : vector<512x128xbf16>, vector<128x128xbf16>, vector<512x128xf32> -> vector<512x128xf32>
    %c0_3 = arith.constant 0 : index
    %c0_4 = arith.constant 0 : index
    %3 = vector.load %arg5[%c0_3, %c0_4] : memref<1x128xf32, #tpu.memory_space<vmem>>, vector<1x128xf32>
    %4 = vector.broadcast %3 : vector<1x128xf32> to vector<512x128xf32>
    %5 = arith.addf %2, %4 : vector<512x128xf32>
    %cst_5 = arith.constant 0.000000e+00 : f32
    %6 = vector.broadcast %cst_5 : f32 to vector<512x128xf32>
    %7 = arith.maximumf %5, %6 : vector<512x128xf32>
    %8 = arith.truncf %7 : vector<512x128xf32> to vector<512x128xbf16>
    %c0_6 = arith.constant 0 : index
    %c0_7 = arith.constant 0 : index
    %9 = vector.load %arg6[%c0_6, %c0_7] : memref<512x128xbf16, #tpu.memory_space<vmem>>, vector<512x128xbf16>
    tpu.vector_store %arg6[%c0_6, %c0_7], %8 {strides = array<i32>} : memref<512x128xbf16, #tpu.memory_space<vmem>>, vector<512x128xbf16>,
    %cst_8 = arith.constant dense<0.000000e+00> : vector<128xf32>
    %10 = vector.multi_reduction <add>, %7, %cst_8 [0] : vector<512x128xf32> to vector<128xf32>
    %11 = vector.shape_cast %10 : vector<128xf32> to vector<1x128xf32>
    %12 = arith.mulf %7, %7 : vector<512x128xf32>
    %cst_9 = arith.constant dense<0.000000e+00> : vector<128xf32>
    %13 = vector.multi_reduction <add>, %12, %cst_9 [0] : vector<512x128xf32> to vector<128xf32>
    %14 = vector.shape_cast %13 : vector<128xf32> to vector<1x128xf32>
    %15 = tpu.iota {dimensions = array<i32: 0>} : vector<8x128xi32>
    %c0_i32 = arith.constant 0 : i32
    %16 = vector.broadcast %c0_i32 : i32 to vector<8x128xi32>
    %17 = arith.cmpi eq, %15, %16 : vector<8x128xi32>
    %cst_10 = arith.constant 0.000000e+00 : f32
    %18 = vector.shape_cast %11 : vector<1x128xf32> to vector<1x128xf32>
    %19 = vector.broadcast %18 : vector<1x128xf32> to vector<8x128xf32>
    %20 = vector.broadcast %cst_10 : f32 to vector<8x128xf32>
    %21 = arith.select %17, %19, %20 : vector<8x128xi1>, vector<8x128xf32>
    %c0_11 = arith.constant 0 : index
    %c0_12 = arith.constant 0 : index
    %22 = vector.load %arg7[%c0_11, %c0_12] : memref<8x128xf32, #tpu.memory_space<vmem>>, vector<8x128xf32>
    tpu.vector_store %arg7[%c0_11, %c0_12], %21 {strides = array<i32>} : memref<8x128xf32, #tpu.memory_space<vmem>>, vector<8x128xf32>,
    %c0_i32_13 = arith.constant 0 : i32
    %23 = vector.broadcast %c0_i32_13 : i32 to vector<8x128xi32>
    %24 = arith.cmpi eq, %15, %23 : vector<8x128xi32>
    %cst_14 = arith.constant 0.000000e+00 : f32
    %25 = vector.shape_cast %14 : vector<1x128xf32> to vector<1x128xf32>
    %26 = vector.broadcast %25 : vector<1x128xf32> to vector<8x128xf32>
    %27 = vector.broadcast %cst_14 : f32 to vector<8x128xf32>
    %28 = arith.select %24, %26, %27 : vector<8x128xi1>, vector<8x128xf32>
    %c0_15 = arith.constant 0 : index
    %c0_16 = arith.constant 0 : index
    %29 = vector.load %arg8[%c0_15, %c0_16] : memref<8x128xf32, #tpu.memory_space<vmem>>, vector<8x128xf32>
    tpu.vector_store %arg8[%c0_15, %c0_16], %28 {strides = array<i32>} : memref<8x128xf32, #tpu.memory_space<vmem>>, vector<8x128xf32>,
    return
  }
  func.func @transform_0(%arg0: i32, %arg1: i32, %arg2: i32) -> (i32, i32) {
    %c0_i32 = arith.constant 0 : i32
    return %arg0, %arg2 : i32, i32
  }
  func.func @transform_1(%arg0: i32, %arg1: i32, %arg2: i32) -> (i32, i32) {
    %c0_i32 = arith.constant 0 : i32
    return %arg2, %arg1 : i32, i32
  }
  func.func @transform_2(%arg0: i32, %arg1: i32, %arg2: i32) -> (i32, i32) {
    %c0_i32 = arith.constant 0 : i32
    %c0_i32_0 = arith.constant 0 : i32
    return %c0_i32, %arg1 : i32, i32
  }
  func.func @transform_3(%arg0: i32, %arg1: i32, %arg2: i32) -> (i32, i32) {
    %c0_i32 = arith.constant 0 : i32
    return %arg0, %arg1 : i32, i32
  }
  func.func @transform_4(%arg0: i32, %arg1: i32, %arg2: i32) -> (i32, i32) {
    %c0_i32 = arith.constant 0 : i32
    return %arg0, %arg1 : i32, i32
  }
  func.func @transform_5(%arg0: i32, %arg1: i32, %arg2: i32) -> (i32, i32) {
    %c0_i32 = arith.constant 0 : i32
    return %arg0, %arg1 : i32, i32
  }
}

</mosaic_0001>

<llo_original>
// kernel: double_conv_forward.5
$region0: #{double_conv_forward.5}
  #allocation0 [shape = 'u32[]', space=smem, size = 0x4, offset = 0x4, fixed_abs, tag = 'smem constant byte address 0x4 - core index']
  #allocation1 [shape = 'u32[72,128]{1,0:T(1,128)}', space=vmem, size = 0x9000, scoped, tag = 'internal scratch']
  %s0 = inlined_call_operand.vmem [shape: bf16[512,128], index: 0, kind: input, shape index: {}, may-alias: {0,3}]
  %s1 = inlined_call_operand.vmem [shape: f32[1,128], index: 1, kind: input, shape index: {}]
  %s2 = inlined_call_operand.vmem [shape: f32[1,128], index: 2, kind: input, shape index: {}]
  %s3 = inlined_call_operand.vmem [shape: bf16[512,128], index: 3, kind: output, shape index: {}, may-alias: {0,3}]
  %s4 = sld [smem:[#allocation0]]
  $region22: #{double_conv_forward.5} parent=0
    _
  %s6 = ssub.s32 1, %s4
  %s7 = scalar_select 0, %s6, %s4
  // Predicated region
  $region2: #{double_conv_forward.5} parent=0 // pred_check
    _
  $region3: #{double_conv_forward.5} parent=0 // pred_check_branch
    %9 = sbr.rel (0) target = $region5
  $region4: #{double_conv_forward.5} parent=0 // pred_region
    _
  $region5: #{double_conv_forward.5} parent=0 // pred_fallthru
    _
  // Predicated region
  $region6: #{double_conv_forward.5} parent=0 // pred_check
    _
  $region7: #{double_conv_forward.5} parent=0 // pred_check_branch
    %11 = sbr.rel (0) target = $region9
  $region8: #{double_conv_forward.5} parent=0 // pred_region
    _
  $region9: #{double_conv_forward.5} parent=0 // pred_fallthru
    _
  // Predicated region
  $region10: #{double_conv_forward.5} parent=0 // pred_check
    _
  $region11: #{double_conv_forward.5} parent=0 // pred_check_branch
    %13 = sbr.rel (0) target = $region13
  $region12: #{double_conv_forward.5} parent=0 // pred_region
    _
  $region13: #{double_conv_forward.5} parent=0 // pred_fallthru
    _
  %v14 = vld [vmem:[%s0] sm:$0xf]
  %v15 = vld [vmem:[%s0 + $0x4] sm:$0xf]
  %v16 = vld [vmem:[%s0 + $0x8] sm:$0xf]
  %v17 = vld [vmem:[%s0 + $0xc] sm:$0xf]
  %v18 = vld [vmem:[%s0 + $0x10] sm:$0xf]
  %v19 = vld [vmem:[%s0 + $0x14] sm:$0xf]
  %v20 = vld [vmem:[%s0 + $0x18] sm:$0xf]
  %v21 = vld [vmem:[%s0 + $0x1c] sm:$0xf]
  %v22 = vld [vmem:[%s0 + $0x20] sm:$0xf]
  %v23 = vld [vmem:[%s0 + $0x24] sm:$0xf]
  %v24 = vld [vmem:[%s0 + $0x28] sm:$0xf]
  %v25 = vld [vmem:[%s0 + $0x2c] sm:$0xf]
  %v26 = vld [vmem:[%s0 + $0x30] sm:$0xf]
  %v27 = vld [vmem:[%s0 + $0x34] sm:$0xf]
  %v28 = vld [vmem:[%s0 + $0x38] sm:$0xf]
  %v29 = vld [vmem:[%s0 + $0x3c] sm:$0xf]
  %v30 = vld [vmem:[%s0 + $0x40] sm:$0xf]
  %v31 = vld [vmem:[%s0 + $0x44] sm:$0xf]
  %v32 = vld [vmem:[%s0 + $0x48] sm:$0xf]
  %v33 = vld [vmem:[%s0 + $0x4c] sm:$0xf]
  %v34 = vld [vmem:[%s0 + $0x50] sm:$0xf]
  %v35 = vld [vmem:[%s0 + $0x54] sm:$0xf]
  %v36 = vld [vmem:[%s0 + $0x58] sm:$0xf]
  %v37 = vld [vmem:[%s0 + $0x5c] sm:$0xf]
  %v38 = vld [vmem:[%s0 + $0x60] sm:$0xf]
  %v39 = vld [vmem:[%s0 + $0x64] sm:$0xf]
  %v40 = vld [vmem:[%s0 + $0x68] sm:$0xf]
  %v41 = vld [vmem:[%s0 + $0x6c] sm:$0xf]
  %v42 = vld [vmem:[%s0 + $0x70] sm:$0xf]
  %v43 = vld [vmem:[%s0 + $0x74] sm:$0xf]
  %v44 = vld [vmem:[%s0 + $0x78] sm:$0xf]
  %v45 = vld [vmem:[%s0 + $0x7c] sm:$0xf]
  %v46 = vld [vmem:[%s0 + $0x80] sm:$0xf]
  %v47 = vld [vmem:[%s0 + $0x84] sm:$0xf]
  %v48 = vld [vmem:[%s0 + $0x88] sm:$0xf]
  %v49 = vld [vmem:[%s0 + $0x8c] sm:$0xf]
  %v50 = vld [vmem:[%s0 + $0x90] sm:$0xf]
  %v51 = vld [vmem:[%s0 + $0x94] sm:$0xf]
  %v52 = vld [vmem:[%s0 + $0x98] sm:$0xf]
  %v53 = vld [vmem:[%s0 + $0x9c] sm:$0xf]
  %v54 = vld [vmem:[%s0 + $0xa0] sm:$0xf]
  %v55 = vld [vmem:[%s0 + $0xa4] sm:$0xf]
  %v56 = vld [vmem:[%s0 + $0xa8] sm:$0xf]
  %v57 = vld [vmem:[%s0 + $0xac] sm:$0xf]
  %v58 = vld [vmem:[%s0 + $0xb0] sm:$0xf]
  %v59 = vld [vmem:[%s0 + $0xb4] sm:$0xf]
  %v60 = vld [vmem:[%s0 + $0xb8] sm:$0xf]
  %v61 = vld [vmem:[%s0 + $0xbc] sm:$0xf]
  %v62 = vld [vmem:[%s0 + $0xc0] sm:$0xf]
  %v63 = vld [vmem:[%s0 + $0xc4] sm:$0xf]
  %v64 = vld [vmem:[%s0 + $0xc8] sm:$0xf]
  %v65 = vld [vmem:[%s0 + $0xcc] sm:$0xf]
  %v66 = vld [vmem:[%s0 + $0xd0] sm:$0xf]
  %v67 = vld [vmem:[%s0 + $0xd4] sm:$0xf]
  %v68 = vld [vmem:[%s0 + $0xd8] sm:$0xf]
  %v69 = vld [vmem:[%s0 + $0xdc] sm:$0xf]
  %v70 = vld [vmem:[%s0 + $0xe0] sm:$0xf]
  %v71 = vld [vmem:[%s0 + $0xe4] sm:$0xf]
  %v72 = vld [vmem:[%s0 + $0xe8] sm:$0xf]
  %v73 = vld [vmem:[%s0 + $0xec] sm:$0xf]
  %v74 = vld [vmem:[%s0 + $0xf0] sm:$0xf]
  %v75 = vld [vmem:[%s0 + $0xf4] sm:$0xf]
  %v76 = vld [vmem:[%s0 + $0xf8] sm:$0xf]
  %v77 = vld [vmem:[%s0 + $0xfc] sm:$0xf]
  %v78 = vunpack.c.l.bf16 %v14
  %v79 = vunpack.c.l.bf16 %v15
  %v80 = vunpack.c.l.bf16 %v16
  %v81 = vunpack.c.l.bf16 %v17
  %v82 = vunpack.c.l.bf16 %v18
  %v83 = vunpack.c.l.bf16 %v19
  %v84 = vunpack.c.l.bf16 %v20
  %v85 = vunpack.c.l.bf16 %v21
  %v86 = vunpack.c.l.bf16 %v22
  %v87 = vunpack.c.l.bf16 %v23
  %v88 = vunpack.c.l.bf16 %v24
  %v89 = vunpack.c.l.bf16 %v25
  %v90 = vunpack.c.l.bf16 %v26
  %v91 = vunpack.c.l.bf16 %v27
  %v92 = vunpack.c.l.bf16 %v28
  %v93 = vunpack.c.l.bf16 %v29
  %v94 = vunpack.c.l.bf16 %v30
  %v95 = vunpack.c.l.bf16 %v31
  %v96 = vunpack.c.l.bf16 %v32
  %v97 = vunpack.c.l.bf16 %v33
  %v98 = vunpack.c.l.bf16 %v34
  %v99 = vunpack.c.l.bf16 %v35
  %v100 = vunpack.c.l.bf16 %v36
  %v101 = vunpack.c.l.bf16 %v37
  %v102 = vunpack.c.l.bf16 %v38
  %v103 = vunpack.c.l.bf16 %v39
  %v104 = vunpack.c.l.bf16 %v40
  %v105 = vunpack.c.l.bf16 %v41
  %v106 = vunpack.c.l.bf16 %v42
  %v107 = vunpack.c.l.bf16 %v43
  %v108 = vunpack.c.l.bf16 %v44
  %v109 = vunpack.c.l.bf16 %v45
  %v110 = vunpack.c.l.bf16 %v46
  %v111 = vunpack.c.l.bf16 %v47
  %v112 = vunpack.c.l.bf16 %v48
  %v113 = vunpack.c.l.bf16 %v49
  %v114 = vunpack.c.l.bf16 %v50
  %v115 = vunpack.c.l.bf16 %v51
  %v116 = vunpack.c.l.bf16 %v52
  %v117 = vunpack.c.l.bf16 %v53
  %v118 = vunpack.c.l.bf16 %v54
  %v119 = vunpack.c.l.bf16 %v55
  %v120 = vunpack.c.l.bf16 %v56
  %v121 = vunpack.c.l.bf16 %v57
  %v122 = vunpack.c.l.bf16 %v58
  %v123 = vunpack.c.l.bf16 %v59
  %v124 = vunpack.c.l.bf16 %v60
  %v125 = vunpack.c.l.bf16 %v61
  %v126 = vunpack.c.l.bf16 %v62
  %v127 = vunpack.c.l.bf16 %v63
  %v128 = vunpack.c.l.bf16 %v64
  %v129 = vunpack.c.l.bf16 %v65
  %v130 = vunpack.c.l.bf16 %v66
  %v131 = vunpack.c.l.bf16 %v67
  %v132 = vunpack.c.l.bf16 %v68
  %v133 = vunpack.c.l.bf16 %v69
  %v134 = vunpack.c.l.bf16 %v70
  %v135 = vunpack.c.l.bf16 %v71
  %v136 = vunpack.c.l.bf16 %v72
  %v137 = vunpack.c.l.bf16 %v73
  %v138 = vunpack.c.l.bf16 %v74
  %v139 = vunpack.c.l.bf16 %v75
  %v140 = vunpack.c.l.bf16 %v76
  %v141 = vunpack.c.l.bf16 %v77
  %v142 = vld [vmem:[%s1] sm:$0x1]
  %v144 = vperm.slane %v142, 0
  %v146 = vmul.f32 %v78, %v144
  %v147 = vmul.f32 %v79, %v144
  %v148 = vmul.f32 %v80, %v144
  %v149 = vmul.f32 %v81, %v144
  %v150 = vmul.f32 %v82, %v144
  %v151 = vmul.f32 %v83, %v144
  %v152 = vmul.f32 %v84, %v144
  %v153 = vmul.f32 %v85, %v144
  %v154 = vmul.f32 %v86, %v144
  %v155 = vmul.f32 %v87, %v144
  %v156 = vmul.f32 %v88, %v144
  %v157 = vmul.f32 %v89, %v144
  %v158 = vmul.f32 %v90, %v144
  %v159 = vmul.f32 %v91, %v144
  %v160 = vmul.f32 %v92, %v144
  %v161 = vmul.f32 %v93, %v144
  %v162 = vmul.f32 %v94, %v144
  %v163 = vmul.f32 %v95, %v144
  %v164 = vmul.f32 %v96, %v144
  %v165 = vmul.f32 %v97, %v144
  %v166 = vmul.f32 %v98, %v144
  %v167 = vmul.f32 %v99, %v144
  %v168 = vmul.f32 %v100, %v144
  %v169 = vmul.f32 %v101, %v144
  %v170 = vmul.f32 %v102, %v144
  %v171 = vmul.f32 %v103, %v144
  %v172 = vmul.f32 %v104, %v144
  %v173 = vmul.f32 %v105, %v144
  %v174 = vmul.f32 %v106, %v144
  %v175 = vmul.f32 %v107, %v144
  %v176 = vmul.f32 %v108, %v144
  %v177 = vmul.f32 %v109, %v144
  %v178 = vmul.f32 %v110, %v144
  %v179 = vmul.f32 %v111, %v144
  %v180 = vmul.f32 %v112, %v144
  %v181 = vmul.f32 %v113, %v144
  %v182 = vmul.f32 %v114, %v144
  %v183 = vmul.f32 %v115, %v144
  %v184 = vmul.f32 %v116, %v144
  %v185 = vmul.f32 %v117, %v144
  %v186 = vmul.f32 %v118, %v144
  %v187 = vmul.f32 %v119, %v144
  %v188 = vmul.f32 %v120, %v144
  %v189 = vmul.f32 %v121, %v144
  %v190 = vmul.f32 %v122, %v144
  %v191 = vmul.f32 %v123, %v144
  %v192 = vmul.f32 %v124, %v144
  %v193 = vmul.f32 %v125, %v144
  %v194 = vmul.f32 %v126, %v144
  %v195 = vmul.f32 %v127, %v144
  %v196 = vmul.f32 %v128, %v144
  %v197 = vmul.f32 %v129, %v144
  %v198 = vmul.f32 %v130, %v144
  %v199 = vmul.f32 %v131, %v144
  %v200 = vmul.f32 %v132, %v144
  %v201 = vmul.f32 %v133, %v144
  %v202 = vmul.f32 %v134, %v144
  %v203 = vmul.f32 %v135, %v144
  %v204 = vmul.f32 %v136, %v144
  %v205 = vmul.f32 %v137, %v144
  %v206 = vmul.f32 %v138, %v144
  %v207 = vmul.f32 %v139, %v144
  %v208 = vmul.f32 %v140, %v144
  %v209 = vmul.f32 %v141, %v144
  %v210 = vld [vmem:[%s2] sm:$0x1]
  %v212 = vperm.slane %v210, 0
  %v214 = vadd.f32 %v146, %v212
  %v215 = vadd.f32 %v147, %v212
  %v216 = vadd.f32 %v148, %v212
  %v217 = vadd.f32 %v149, %v212
  %v218 = vadd.f32 %v150, %v212
  %v219 = vadd.f32 %v151, %v212
  %v220 = vadd.f32 %v152, %v212
  %v221 = vadd.f32 %v153, %v212
  %v222 = vadd.f32 %v154, %v212
  %v223 = vadd.f32 %v155, %v212
  %v224 = vadd.f32 %v156, %v212
  %v225 = vadd.f32 %v157, %v212
  %v226 = vadd.f32 %v158, %v212
  %v227 = vadd.f32 %v159, %v212
  %v228 = vadd.f32 %v160, %v212
  %v229 = vadd.f32 %v161, %v212
  %v230 = vadd.f32 %v162, %v212
  %v231 = vadd.f32 %v163, %v212
  %v232 = vadd.f32 %v164, %v212
  %v233 = vadd.f32 %v165, %v212
  %v234 = vadd.f32 %v166, %v212
  %v235 = vadd.f32 %v167, %v212
  %v236 = vadd.f32 %v168, %v212
  %v237 = vadd.f32 %v169, %v212
  %v238 = vadd.f32 %v170, %v212
  %v239 = vadd.f32 %v171, %v212
  %v240 = vadd.f32 %v172, %v212
  %v241 = vadd.f32 %v173, %v212
  %v242 = vadd.f32 %v174, %v212
  %v243 = vadd.f32 %v175, %v212
  %v244 = vadd.f32 %v176, %v212
  %v245 = vadd.f32 %v177, %v212
  %v246 = vadd.f32 %v178, %v212
  %v247 = vadd.f32 %v179, %v212
  %v248 = vadd.f32 %v180, %v212
  %v249 = vadd.f32 %v181, %v212
  %v250 = vadd.f32 %v182, %v212
  %v251 = vadd.f32 %v183, %v212
  %v252 = vadd.f32 %v184, %v212
  %v253 = vadd.f32 %v185, %v212
  %v254 = vadd.f32 %v186, %v212
  %v255 = vadd.f32 %v187, %v212
  %v256 = vadd.f32 %v188, %v212
  %v257 = vadd.f32 %v189, %v212
  %v258 = vadd.f32 %v190, %v212
  %v259 = vadd.f32 %v191, %v212
  %v260 = vadd.f32 %v192, %v212
  %v261 = vadd.f32 %v193, %v212
  %v262 = vadd.f32 %v194, %v212
  %v263 = vadd.f32 %v195, %v212
  %v264 = vadd.f32 %v196, %v212
  %v265 = vadd.f32 %v197, %v212
  %v266 = vadd.f32 %v198, %v212
  %v267 = vadd.f32 %v199, %v212
  %v268 = vadd.f32 %v200, %v212
  %v269 = vadd.f32 %v201, %v212
  %v270 = vadd.f32 %v202, %v212
  %v271 = vadd.f32 %v203, %v212
  %v272 = vadd.f32 %v204, %v212
  %v273 = vadd.f32 %v205, %v212
  %v274 = vadd.f32 %v206, %v212
  %v275 = vadd.f32 %v207, %v212
  %v276 = vadd.f32 %v208, %v212
  %v277 = vadd.f32 %v209, %v212
  %v278 = vpack.c.bf16 %v214, %v214
  %v279 = vpack.c.bf16 %v215, %v215
  %v280 = vpack.c.bf16 %v216, %v216
  %v281 = vpack.c.bf16 %v217, %v217
  %v282 = vpack.c.bf16 %v218, %v218
  %v283 = vpack.c.bf16 %v219, %v219
  %v284 = vpack.c.bf16 %v220, %v220
  %v285 = vpack.c.bf16 %v221, %v221
  %v286 = vpack.c.bf16 %v222, %v222
  %v287 = vpack.c.bf16 %v223, %v223
  %v288 = vpack.c.bf16 %v224, %v224
  %v289 = vpack.c.bf16 %v225, %v225
  %v290 = vpack.c.bf16 %v226, %v226
  %v291 = vpack.c.bf16 %v227, %v227
  %v292 = vpack.c.bf16 %v228, %v228
  %v293 = vpack.c.bf16 %v229, %v229
  %v294 = vpack.c.bf16 %v230, %v230
  %v295 = vpack.c.bf16 %v231, %v231
  %v296 = vpack.c.bf16 %v232, %v232
  %v297 = vpack.c.bf16 %v233, %v233
  %v298 = vpack.c.bf16 %v234, %v234
  %v299 = vpack.c.bf16 %v235, %v235
  %v300 = vpack.c.bf16 %v236, %v236
  %v301 = vpack.c.bf16 %v237, %v237
  %v302 = vpack.c.bf16 %v238, %v238
  %v303 = vpack.c.bf16 %v239, %v239
  %v304 = vpack.c.bf16 %v240, %v240
  %v305 = vpack.c.bf16 %v241, %v241
  %v306 = vpack.c.bf16 %v242, %v242
  %v307 = vpack.c.bf16 %v243, %v243
  %v308 = vpack.c.bf16 %v244, %v244
  %v309 = vpack.c.bf16 %v245, %v245
  %v310 = vpack.c.bf16 %v246, %v246
  %v311 = vpack.c.bf16 %v247, %v247
  %v312 = vpack.c.bf16 %v248, %v248
  %v313 = vpack.c.bf16 %v249, %v249
  %v314 = vpack.c.bf16 %v250, %v250
  %v315 = vpack.c.bf16 %v251, %v251
  %v316 = vpack.c.bf16 %v252, %v252
  %v317 = vpack.c.bf16 %v253, %v253
  %v318 = vpack.c.bf16 %v254, %v254
  %v319 = vpack.c.bf16 %v255, %v255
  %v320 = vpack.c.bf16 %v256, %v256
  %v321 = vpack.c.bf16 %v257, %v257
  %v322 = vpack.c.bf16 %v258, %v258
  %v323 = vpack.c.bf16 %v259, %v259
  %v324 = vpack.c.bf16 %v260, %v260
  %v325 = vpack.c.bf16 %v261, %v261
  %v326 = vpack.c.bf16 %v262, %v262
  %v327 = vpack.c.bf16 %v263, %v263
  %v328 = vpack.c.bf16 %v264, %v264
  %v329 = vpack.c.bf16 %v265, %v265
  %v330 = vpack.c.bf16 %v266, %v266
  %v331 = vpack.c.bf16 %v267, %v267
  %v332 = vpack.c.bf16 %v268, %v268
  %v333 = vpack.c.bf16 %v269, %v269
  %v334 = vpack.c.bf16 %v270, %v270
  %v335 = vpack.c.bf16 %v271, %v271
  %v336 = vpack.c.bf16 %v272, %v272
  %v337 = vpack.c.bf16 %v273, %v273
  %v338 = vpack.c.bf16 %v274, %v274
  %v339 = vpack.c.bf16 %v275, %v275
  %v340 = vpack.c.bf16 %v276, %v276
  %v341 = vpack.c.bf16 %v277, %v277
  %342 = vst [vmem:[%s3] sm:$0xf] %v278
  %343 = vst [vmem:[%s3 + $0x4] sm:$0xf] %v279
  %344 = vst [vmem:[%s3 + $0x8] sm:$0xf] %v280
  %345 = vst [vmem:[%s3 + $0xc] sm:$0xf] %v281
  %346 = vst [vmem:[%s3 + $0x10] sm:$0xf] %v282
  %347 = vst [vmem:[%s3 + $0x14] sm:$0xf] %v283
  %348 = vst [vmem:[%s3 + $0x18] sm:$0xf] %v284
  %349 = vst [vmem:[%s3 + $0x1c] sm:$0xf] %v285
  %350 = vst [vmem:[%s3 + $0x20] sm:$0xf] %v286
  %351 = vst [vmem:[%s3 + $0x24] sm:$0xf] %v287
  %352 = vst [vmem:[%s3 + $0x28] sm:$0xf] %v288
  %353 = vst [vmem:[%s3 + $0x2c] sm:$0xf] %v289
  %354 = vst [vmem:[%s3 + $0x30] sm:$0xf] %v290
  %355 = vst [vmem:[%s3 + $0x34] sm:$0xf] %v291
  %356 = vst [vmem:[%s3 + $0x38] sm:$0xf] %v292
  %357 = vst [vmem:[%s3 + $0x3c] sm:$0xf] %v293
  %358 = vst [vmem:[%s3 + $0x40] sm:$0xf] %v294
  %359 = vst [vmem:[%s3 + $0x44] sm:$0xf] %v295
  %360 = vst [vmem:[%s3 + $0x48] sm:$0xf] %v296
  %361 = vst [vmem:[%s3 + $0x4c] sm:$0xf] %v297
  %362 = vst [vmem:[%s3 + $0x50] sm:$0xf] %v298
  %363 = vst [vmem:[%s3 + $0x54] sm:$0xf] %v299
  %364 = vst [vmem:[%s3 + $0x58] sm:$0xf] %v300
  %365 = vst [vmem:[%s3 + $0x5c] sm:$0xf] %v301
  %366 = vst [vmem:[%s3 + $0x60] sm:$0xf] %v302
  %367 = vst [vmem:[%s3 + $0x64] sm:$0xf] %v303
  %368 = vst [vmem:[%s3 + $0x68] sm:$0xf] %v304
  %369 = vst [vmem:[%s3 + $0x6c] sm:$0xf] %v305
  %370 = vst [vmem:[%s3 + $0x70] sm:$0xf] %v306
  %371 = vst [vmem:[%s3 + $0x74] sm:$0xf] %v307
  %372 = vst [vmem:[%s3 + $0x78] sm:$0xf] %v308
  %373 = vst [vmem:[%s3 + $0x7c] sm:$0xf] %v309
  %374 = vst [vmem:[%s3 + $0x80] sm:$0xf] %v310
  %375 = vst [vmem:[%s3 + $0x84] sm:$0xf] %v311
  %376 = vst [vmem:[%s3 + $0x88] sm:$0xf] %v312
  %377 = vst [vmem:[%s3 + $0x8c] sm:$0xf] %v313
  %378 = vst [vmem:[%s3 + $0x90] sm:$0xf] %v314
  %379 = vst [vmem:[%s3 + $0x94] sm:$0xf] %v315
  %380 = vst [vmem:[%s3 + $0x98] sm:$0xf] %v316
  %381 = vst [vmem:[%s3 + $0x9c] sm:$0xf] %v317
  %382 = vst [vmem:[%s3 + $0xa0] sm:$0xf] %v318
  %383 = vst [vmem:[%s3 + $0xa4] sm:$0xf] %v319
  %384 = vst [vmem:[%s3 + $0xa8] sm:$0xf] %v320
  %385 = vst [vmem:[%s3 + $0xac] sm:$0xf] %v321
  %386 = vst [vmem:[%s3 + $0xb0] sm:$0xf] %v322
  %387 = vst [vmem:[%s3 + $0xb4] sm:$0xf] %v323
  %388 = vst [vmem:[%s3 + $0xb8] sm:$0xf] %v324
  %389 = vst [vmem:[%s3 + $0xbc] sm:$0xf] %v325
  %390 = vst [vmem:[%s3 + $0xc0] sm:$0xf] %v326
  %391 = vst [vmem:[%s3 + $0xc4] sm:$0xf] %v327
  %392 = vst [vmem:[%s3 + $0xc8] sm:$0xf] %v328
  %393 = vst [vmem:[%s3 + $0xcc] sm:$0xf] %v329
  %394 = vst [vmem:[%s3 + $0xd0] sm:$0xf] %v330
  %395 = vst [vmem:[%s3 + $0xd4] sm:$0xf] %v331
  %396 = vst [vmem:[%s3 + $0xd8] sm:$0xf] %v332
  %397 = vst [vmem:[%s3 + $0xdc] sm:$0xf] %v333
  %398 = vst [vmem:[%s3 + $0xe0] sm:$0xf] %v334
  %399 = vst [vmem:[%s3 + $0xe4] sm:$0xf] %v335
  %400 = vst [vmem:[%s3 + $0xe8] sm:$0xf] %v336
  %401 = vst [vmem:[%s3 + $0xec] sm:$0xf] %v337
  %402 = vst [vmem:[%s3 + $0xf0] sm:$0xf] %v338
  %403 = vst [vmem:[%s3 + $0xf4] sm:$0xf] %v339
  %404 = vst [vmem:[%s3 + $0xf8] sm:$0xf] %v340
  %405 = vst [vmem:[%s3 + $0xfc] sm:$0xf] %v341
  // Predicated region
  $region14: #{double_conv_forward.5} parent=0 // pred_check
    _
  $region15: #{double_conv_forward.5} parent=0 // pred_check_branch
    %407 = sbr.rel (0) target = $region17
  $region16: #{double_conv_forward.5} parent=0 // pred_region
    _
  $region17: #{double_conv_forward.5} parent=0 // pred_fallthru
    _
  // Predicated region
  $region18: #{double_conv_forward.5} parent=0 // pred_check
    _
  $region19: #{double_conv_forward.5} parent=0 // pred_check_branch
    %409 = sbr.rel (0) target = $region21
  $region20: #{double_conv_forward.5} parent=0 // pred_region
    _
  $region21: #{double_conv_forward.5} parent=0 // pred_fallthru
    _

// kernel: double_conv_forward.4
$region0: #{double_conv_forward.4}
  #allocation0 [shape = 'u32[]', space=smem, size = 0x4, offset = 0x4, fixed_abs, tag = 'smem constant byte address 0x4 - core index']
  #allocation1 [shape = 'u32[72,128]{1,0:T(1,128)}', space=vmem, size = 0x9000, scoped, tag = 'internal scratch']
  %s0 = inlined_call_operand.vmem [shape: bf16[512,128], index: 0, kind: input, shape index: {}]
  %s1 = inlined_call_operand.vmem [shape: bf16[128,128], index: 1, kind: input, shape index: {}]
  %s2 = inlined_call_operand.vmem [shape: f32[1,128], index: 2, kind: input, shape index: {}]
  %s3 = inlined_call_operand.vmem [shape: bf16[512,128], index: 3, kind: output, shape index: {0}]
  %s4 = inlined_call_operand.vmem [shape: f32[8,128], index: 4, kind: output, shape index: {1}]
  %s5 = inlined_call_operand.vmem [shape: f32[8,128], index: 5, kind: output, shape index: {2}]
  %6 = xla_tuple %s3, %s4, %s5
  %s7 = sld [smem:[#allocation0]]
  $region38: #{double_conv_forward.4} parent=0
    _
  %s9 = ssub.s32 1, %s7
  %s10 = scalar_select 0, %s9, %s7
  // Predicated region
  $region2: #{double_conv_forward.4} parent=0 // pred_check
    _
  $region3: #{double_conv_forward.4} parent=0 // pred_check_branch
    %12 = sbr.rel (0) target = $region5
  $region4: #{double_conv_forward.4} parent=0 // pred_region
    _
  $region5: #{double_conv_forward.4} parent=0 // pred_fallthru
    _
  // Predicated region
  $region6: #{double_conv_forward.4} parent=0 // pred_check
    _
  $region7: #{double_conv_forward.4} parent=0 // pred_check_branch
    %14 = sbr.rel (0) target = $region9
  $region8: #{double_conv_forward.4} parent=0 // pred_region
    _
  $region9: #{double_conv_forward.4} parent=0 // pred_fallthru
    _
  // Predicated region
  $region10: #{double_conv_forward.4} parent=0 // pred_check
    _
  $region11: #{double_conv_forward.4} parent=0 // pred_check_branch
    %16 = sbr.rel (0) target = $region13
  $region12: #{double_conv_forward.4} parent=0 // pred_region
    _
  $region13: #{double_conv_forward.4} parent=0 // pred_fallthru
    _
  %v17 = vld [vmem:[%s0] sm:$0xf]
  %v18 = vld [vmem:[%s0 + $0x4] sm:$0xf]
  %v19 = vld [vmem:[%s0 + $0x8] sm:$0xf]
  %v20 = vld [vmem:[%s0 + $0xc] sm:$0xf]
  %v21 = vld [vmem:[%s0 + $0x10] sm:$0xf]
  %v22 = vld [vmem:[%s0 + $0x14] sm:$0xf]
  %v23 = vld [vmem:[%s0 + $0x18] sm:$0xf]
  %v24 = vld [vmem:[%s0 + $0x1c] sm:$0xf]
  %v25 = vld [vmem:[%s0 + $0x20] sm:$0xf]
  %v26 = vld [vmem:[%s0 + $0x24] sm:$0xf]
  %v27 = vld [vmem:[%s0 + $0x28] sm:$0xf]
  %v28 = vld [vmem:[%s0 + $0x2c] sm:$0xf]
  %v29 = vld [vmem:[%s0 + $0x30] sm:$0xf]
  %v30 = vld [vmem:[%s0 + $0x34] sm:$0xf]
  %v31 = vld [vmem:[%s0 + $0x38] sm:$0xf]
  %v32 = vld [vmem:[%s0 + $0x3c] sm:$0xf]
  %v33 = vld [vmem:[%s0 + $0x40] sm:$0xf]
  %v34 = vld [vmem:[%s0 + $0x44] sm:$0xf]
  %v35 = vld [vmem:[%s0 + $0x48] sm:$0xf]
  %v36 = vld [vmem:[%s0 + $0x4c] sm:$0xf]
  %v37 = vld [vmem:[%s0 + $0x50] sm:$0xf]
  %v38 = vld [vmem:[%s0 + $0x54] sm:$0xf]
  %v39 = vld [vmem:[%s0 + $0x58] sm:$0xf]
  %v40 = vld [vmem:[%s0 + $0x5c] sm:$0xf]
  %v41 = vld [vmem:[%s0 + $0x60] sm:$0xf]
  %v42 = vld [vmem:[%s0 + $0x64] sm:$0xf]
  %v43 = vld [vmem:[%s0 + $0x68] sm:$0xf]
  %v44 = vld [vmem:[%s0 + $0x6c] sm:$0xf]
  %v45 = vld [vmem:[%s0 + $0x70] sm:$0xf]
  %v46 = vld [vmem:[%s0 + $0x74] sm:$0xf]
  %v47 = vld [vmem:[%s0 + $0x78] sm:$0xf]
  %v48 = vld [vmem:[%s0 + $0x7c] sm:$0xf]
  %v49 = vld [vmem:[%s0 + $0x80] sm:$0xf]
  %v50 = vld [vmem:[%s0 + $0x84] sm:$0xf]
  %v51 = vld [vmem:[%s0 + $0x88] sm:$0xf]
  %v52 = vld [vmem:[%s0 + $0x8c] sm:$0xf]
  %v53 = vld [vmem:[%s0 + $0x90] sm:$0xf]
  %v54 = vld [vmem:[%s0 + $0x94] sm:$0xf]
  %v55 = vld [vmem:[%s0 + $0x98] sm:$0xf]
  %v56 = vld [vmem:[%s0 + $0x9c] sm:$0xf]
  %v57 = vld [vmem:[%s0 + $0xa0] sm:$0xf]
  %v58 = vld [vmem:[%s0 + $0xa4] sm:$0xf]
  %v59 = vld [vmem:[%s0 + $0xa8] sm:$0xf]
  %v60 = vld [vmem:[%s0 + $0xac] sm:$0xf]
  %v61 = vld [vmem:[%s0 + $0xb0] sm:$0xf]
  %v62 = vld [vmem:[%s0 + $0xb4] sm:$0xf]
  %v63 = vld [vmem:[%s0 + $0xb8] sm:$0xf]
  %v64 = vld [vmem:[%s0 + $0xbc] sm:$0xf]
  %v65 = vld [vmem:[%s0 + $0xc0] sm:$0xf]
  %v66 = vld [vmem:[%s0 + $0xc4] sm:$0xf]
  %v67 = vld [vmem:[%s0 + $0xc8] sm:$0xf]
  %v68 = vld [vmem:[%s0 + $0xcc] sm:$0xf]
  %v69 = vld [vmem:[%s0 + $0xd0] sm:$0xf]
  %v70 = vld [vmem:[%s0 + $0xd4] sm:$0xf]
  %v71 = vld [vmem:[%s0 + $0xd8] sm:$0xf]
  %v72 = vld [vmem:[%s0 + $0xdc] sm:$0xf]
  %v73 = vld [vmem:[%s0 + $0xe0] sm:$0xf]
  %v74 = vld [vmem:[%s0 + $0xe4] sm:$0xf]
  %v75 = vld [vmem:[%s0 + $0xe8] sm:$0xf]
  %v76 = vld [vmem:[%s0 + $0xec] sm:$0xf]
  %v77 = vld [vmem:[%s0 + $0xf0] sm:$0xf]
  %v78 = vld [vmem:[%s0 + $0xf4] sm:$0xf]
  %v79 = vld [vmem:[%s0 + $0xf8] sm:$0xf]
  %v80 = vld [vmem:[%s0 + $0xfc] sm:$0xf]
  %v81 = vld [vmem:[%s1] sm:$0xf]
  %v82 = vld [vmem:[%s1 + $0x4] sm:$0xf]
  %v83 = vld [vmem:[%s1 + $0x8] sm:$0xf]
  %v84 = vld [vmem:[%s1 + $0xc] sm:$0xf]
  %v85 = vld [vmem:[%s1 + $0x10] sm:$0xf]
  %v86 = vld [vmem:[%s1 + $0x14] sm:$0xf]
  %v87 = vld [vmem:[%s1 + $0x18] sm:$0xf]
  %v88 = vld [vmem:[%s1 + $0x1c] sm:$0xf]
  %v89 = vld [vmem:[%s1 + $0x20] sm:$0xf]
  %v90 = vld [vmem:[%s1 + $0x24] sm:$0xf]
  %v91 = vld [vmem:[%s1 + $0x28] sm:$0xf]
  %v92 = vld [vmem:[%s1 + $0x2c] sm:$0xf]
  %v93 = vld [vmem:[%s1 + $0x30] sm:$0xf]
  %v94 = vld [vmem:[%s1 + $0x34] sm:$0xf]
  %v95 = vld [vmem:[%s1 + $0x38] sm:$0xf]
  %v96 = vld [vmem:[%s1 + $0x3c] sm:$0xf]
  %v97 = vld [vmem:[%s2] sm:$0x1]
  %v99 = vperm.slane %v97, 0
  %v165 = vunpack.c.l.b16 %v17
  %v166 = vunpack.c.l.b16 %v18
  %v167 = vunpack.c.l.b16 %v19
  %v168 = vunpack.c.l.b16 %v20
  %v169 = vunpack.c.l.b16 %v21
  %v170 = vunpack.c.l.b16 %v22
  %v171 = vunpack.c.l.b16 %v23
  %v172 = vunpack.c.l.b16 %v24
  %v173 = vunpack.c.l.b16 %v25
  %v174 = vunpack.c.l.b16 %v26
  %v175 = vunpack.c.l.b16 %v27
  %v176 = vunpack.c.l.b16 %v28
  %v177 = vunpack.c.l.b16 %v29
  %v178 = vunpack.c.l.b16 %v30
  %v179 = vunpack.c.l.b16 %v31
  %v180 = vunpack.c.l.b16 %v32
  %v181 = vunpack.c.l.b16 %v33
  %v182 = vunpack.c.l.b16 %v34
  %v183 = vunpack.c.l.b16 %v35
  %v184 = vunpack.c.l.b16 %v36
  %v185 = vunpack.c.l.b16 %v37
  %v186 = vunpack.c.l.b16 %v38
  %v187 = vunpack.c.l.b16 %v39
  %v188 = vunpack.c.l.b16 %v40
  %v189 = vunpack.c.l.b16 %v41
  %v190 = vunpack.c.l.b16 %v42
  %v191 = vunpack.c.l.b16 %v43
  %v192 = vunpack.c.l.b16 %v44
  %v193 = vunpack.c.l.b16 %v45
  %v194 = vunpack.c.l.b16 %v46
  %v195 = vunpack.c.l.b16 %v47
  %v196 = vunpack.c.l.b16 %v48
  %v197 = vunpack.c.l.b16 %v49
  %v198 = vunpack.c.l.b16 %v50
  %v199 = vunpack.c.l.b16 %v51
  %v200 = vunpack.c.l.b16 %v52
  %v201 = vunpack.c.l.b16 %v53
  %v202 = vunpack.c.l.b16 %v54
  %v203 = vunpack.c.l.b16 %v55
  %v204 = vunpack.c.l.b16 %v56
  %v205 = vunpack.c.l.b16 %v57
  %v206 = vunpack.c.l.b16 %v58
  %v207 = vunpack.c.l.b16 %v59
  %v208 = vunpack.c.l.b16 %v60
  %v209 = vunpack.c.l.b16 %v61
  %v210 = vunpack.c.l.b16 %v62
  %v211 = vunpack.c.l.b16 %v63
  %v212 = vunpack.c.l.b16 %v64
  %v213 = vunpack.c.l.b16 %v65
  %v214 = vunpack.c.l.b16 %v66
  %v215 = vunpack.c.l.b16 %v67
  %v216 = vunpack.c.l.b16 %v68
  %v217 = vunpack.c.l.b16 %v69
  %v218 = vunpack.c.l.b16 %v70
  %v219 = vunpack.c.l.b16 %v71
  %v220 = vunpack.c.l.b16 %v72
  %v221 = vunpack.c.l.b16 %v73
  %v222 = vunpack.c.l.b16 %v74
  %v223 = vunpack.c.l.b16 %v75
  %v224 = vunpack.c.l.b16 %v76
  %v225 = vunpack.c.l.b16 %v77
  %v226 = vunpack.c.l.b16 %v78
  %v227 = vunpack.c.l.b16 %v79
  %v228 = vunpack.c.l.b16 %v80
  %v229 = vpack.c.b16 %v166, %v165
  %v230 = vpack.c.b16 %v168, %v167
  %v231 = vpack.c.b16 %v170, %v169
  %v232 = vpack.c.b16 %v172, %v171
  %v233 = vpack.c.b16 %v174, %v173
  %v234 = vpack.c.b16 %v176, %v175
  %v235 = vpack.c.b16 %v178, %v177
  %v236 = vpack.c.b16 %v180, %v179
  %v237 = vpack.c.b16 %v182, %v181
  %v238 = vpack.c.b16 %v184, %v183
  %v239 = vpack.c.b16 %v186, %v185
  %v240 = vpack.c.b16 %v188, %v187
  %v241 = vpack.c.b16 %v190, %v189
  %v242 = vpack.c.b16 %v192, %v191
  %v243 = vpack.c.b16 %v194, %v193
  %v244 = vpack.c.b16 %v196, %v195
  %v245 = vpack.c.b16 %v198, %v197
  %v246 = vpack.c.b16 %v200, %v199
  %v247 = vpack.c.b16 %v202, %v201
  %v248 = vpack.c.b16 %v204, %v203
  %v249 = vpack.c.b16 %v206, %v205
  %v250 = vpack.c.b16 %v208, %v207
  %v251 = vpack.c.b16 %v210, %v209
  %v252 = vpack.c.b16 %v212, %v211
  %v253 = vpack.c.b16 %v214, %v213
  %v254 = vpack.c.b16 %v216, %v215
  %v255 = vpack.c.b16 %v218, %v217
  %v256 = vpack.c.b16 %v220, %v219
  %v257 = vpack.c.b16 %v222, %v221
  %v258 = vpack.c.b16 %v224, %v223
  %v259 = vpack.c.b16 %v226, %v225
  %v260 = vpack.c.b16 %v228, %v227
  %v309 = vunpack.c.l.b16 %v81
  %v310 = vunpack.c.l.b16 %v82
  %v311 = vunpack.c.l.b16 %v83
  %v312 = vunpack.c.l.b16 %v84
  %v313 = vunpack.c.l.b16 %v85
  %v314 = vunpack.c.l.b16 %v86
  %v315 = vunpack.c.l.b16 %v87
  %v316 = vunpack.c.l.b16 %v88
  %v317 = vunpack.c.l.b16 %v89
  %v318 = vunpack.c.l.b16 %v90
  %v319 = vunpack.c.l.b16 %v91
  %v320 = vunpack.c.l.b16 %v92
  %v321 = vunpack.c.l.b16 %v93
  %v322 = vunpack.c.l.b16 %v94
  %v323 = vunpack.c.l.b16 %v95
  %v324 = vunpack.c.l.b16 %v96
  %v325 = vpack.c.b16 %v310, %v309
  %v326 = vpack.c.b16 %v312, %v311
  %v327 = vpack.c.b16 %v314, %v313
  %v328 = vpack.c.b16 %v316, %v315
  %v329 = vpack.c.b16 %v318, %v317
  %v330 = vpack.c.b16 %v320, %v319
  %v331 = vpack.c.b16 %v322, %v321
  %v332 = vpack.c.b16 %v324, %v323
  %341 = vmatpush.bf16.msra.mxu0 %v332
  %342 = vmatpush.bf16.msra.mxu0 %v331
  %343 = vmatpush.bf16.msra.mxu0 %v330
  %344 = vmatpush.bf16.msra.mxu0 %v329
  %345 = vmatpush.bf16.msra.mxu0 %v328
  %346 = vmatpush.bf16.msra.mxu0 %v327
  %347 = vmatpush.bf16.msra.mxu0 %v326
  %348 = vmatpush.bf16.msra.mxu0 %v325
  %349 = vmatmul.bf16.gmra.mxu0 %v229
  %v350 = vpop.f32.mrf.mxu0
  %v351 = vadd.f32 %v99, %v350
  %v352 = vpop.f32.mrf.mxu0
  %v353 = vadd.f32 %v99, %v352
  %354 = vmatmul.bf16.gmra.mxu0 %v230
  %v355 = vpop.f32.mrf.mxu0
  %v356 = vadd.f32 %v99, %v355
  %v357 = vpop.f32.mrf.mxu0
  %v358 = vadd.f32 %v99, %v357
  %359 = vmatmul.bf16.gmra.mxu0 %v231
  %v360 = vpop.f32.mrf.mxu0
  %v361 = vadd.f32 %v99, %v360
  %v362 = vpop.f32.mrf.mxu0
  %v363 = vadd.f32 %v99, %v362
  %364 = vmatmul.bf16.gmra.mxu0 %v232
  %v365 = vpop.f32.mrf.mxu0
  %v366 = vadd.f32 %v99, %v365
  %v367 = vpop.f32.mrf.mxu0
  %v368 = vadd.f32 %v99, %v367
  %369 = vmatmul.bf16.gmra.mxu0 %v233
  %v370 = vpop.f32.mrf.mxu0
  %v371 = vadd.f32 %v99, %v370
  %v372 = vpop.f32.mrf.mxu0
  %v373 = vadd.f32 %v99, %v372
  %374 = vmatmul.bf16.gmra.mxu0 %v234
  %v375 = vpop.f32.mrf.mxu0
  %v376 = vadd.f32 %v99, %v375
  %v377 = vpop.f32.mrf.mxu0
  %v378 = vadd.f32 %v99, %v377
  %379 = vmatmul.bf16.gmra.mxu0 %v235
  %v380 = vpop.f32.mrf.mxu0
  %v381 = vadd.f32 %v99, %v380
  %v382 = vpop.f32.mrf.mxu0
  %v383 = vadd.f32 %v99, %v382
  %384 = vmatmul.bf16.gmra.mxu0 %v236
  %v385 = vpop.f32.mrf.mxu0
  %v386 = vadd.f32 %v99, %v385
  %v387 = vpop.f32.mrf.mxu0
  %v388 = vadd.f32 %v99, %v387
  %389 = vmatmul.bf16.gmra.mxu0 %v237
  %v390 = vpop.f32.mrf.mxu0
  %v391 = vadd.f32 %v99, %v390
  %v392 = vpop.f32.mrf.mxu0
  %v393 = vadd.f32 %v99, %v392
  %394 = vmatmul.bf16.gmra.mxu0 %v238
  %v395 = vpop.f32.mrf.mxu0
  %v396 = vadd.f32 %v99, %v395
  %v397 = vpop.f32.mrf.mxu0
  %v398 = vadd.f32 %v99, %v397
  %399 = vmatmul.bf16.gmra.mxu0 %v239
  %v400 = vpop.f32.mrf.mxu0
  %v401 = vadd.f32 %v99, %v400
  %v402 = vpop.f32.mrf.mxu0
  %v403 = vadd.f32 %v99, %v402
  %404 = vmatmul.bf16.gmra.mxu0 %v240
  %v405 = vpop.f32.mrf.mxu0
  %v406 = vadd.f32 %v99, %v405
  %v407 = vpop.f32.mrf.mxu0
  %v408 = vadd.f32 %v99, %v407
  %409 = vmatmul.bf16.gmra.mxu0 %v241
  %v410 = vpop.f32.mrf.mxu0
  %v411 = vadd.f32 %v99, %v410
  %v412 = vpop.f32.mrf.mxu0
  %v413 = vadd.f32 %v99, %v412
  %414 = vmatmul.bf16.gmra.mxu0 %v242
  %v415 = vpop.f32.mrf.mxu0
  %v416 = vadd.f32 %v99, %v415
  %v417 = vpop.f32.mrf.mxu0
  %v418 = vadd.f32 %v99, %v417
  %419 = vmatmul.bf16.gmra.mxu0 %v243
  %v420 = vpop.f32.mrf.mxu0
  %v421 = vadd.f32 %v99, %v420
  %v422 = vpop.f32.mrf.mxu0
  %v423 = vadd.f32 %v99, %v422
  %424 = vmatmul.bf16.gmra.mxu0 %v244
  %v425 = vpop.f32.mrf.mxu0
  %v426 = vadd.f32 %v99, %v425
  %v427 = vpop.f32.mrf.mxu0
  %v428 = vadd.f32 %v99, %v427
  %429 = vmatmul.bf16.gmra.mxu0 %v245
  %v430 = vpop.f32.mrf.mxu0
  %v431 = vadd.f32 %v99, %v430
  %v432 = vpop.f32.mrf.mxu0
  %v433 = vadd.f32 %v99, %v432
  %434 = vmatmul.bf16.gmra.mxu0 %v246
  %v435 = vpop.f32.mrf.mxu0
  %v436 = vadd.f32 %v99, %v435
  %v437 = vpop.f32.mrf.mxu0
  %v438 = vadd.f32 %v99, %v437
  %439 = vmatmul.bf16.gmra.mxu0 %v247
  %v440 = vpop.f32.mrf.mxu0
  %v441 = vadd.f32 %v99, %v440
  %v442 = vpop.f32.mrf.mxu0
  %v443 = vadd.f32 %v99, %v442
  %444 = vmatmul.bf16.gmra.mxu0 %v248
  %v445 = vpop.f32.mrf.mxu0
  %v446 = vadd.f32 %v99, %v445
  %v447 = vpop.f32.mrf.mxu0
  %v448 = vadd.f32 %v99, %v447
  %449 = vmatmul.bf16.gmra.mxu0 %v249
  %v450 = vpop.f32.mrf.mxu0
  %v451 = vadd.f32 %v99, %v450
  %v452 = vpop.f32.mrf.mxu0
  %v453 = vadd.f32 %v99, %v452
  %454 = vmatmul.bf16.gmra.mxu0 %v250
  %v455 = vpop.f32.mrf.mxu0
  %v456 = vadd.f32 %v99, %v455
  %v457 = vpop.f32.mrf.mxu0
  %v458 = vadd.f32 %v99, %v457
  %459 = vmatmul.bf16.gmra.mxu0 %v251
  %v460 = vpop.f32.mrf.mxu0
  %v461 = vadd.f32 %v99, %v460
  %v462 = vpop.f32.mrf.mxu0
  %v463 = vadd.f32 %v99, %v462
  %464 = vmatmul.bf16.gmra.mxu0 %v252
  %v465 = vpop.f32.mrf.mxu0
  %v466 = vadd.f32 %v99, %v465
  %v467 = vpop.f32.mrf.mxu0
  %v468 = vadd.f32 %v99, %v467
  %469 = vmatmul.bf16.gmra.mxu0 %v253
  %v470 = vpop.f32.mrf.mxu0
  %v471 = vadd.f32 %v99, %v470
  %v472 = vpop.f32.mrf.mxu0
  %v473 = vadd.f32 %v99, %v472
  %474 = vmatmul.bf16.gmra.mxu0 %v254
  %v475 = vpop.f32.mrf.mxu0
  %v476 = vadd.f32 %v99, %v475
  %v477 = vpop.f32.mrf.mxu0
  %v478 = vadd.f32 %v99, %v477
  %479 = vmatmul.bf16.gmra.mxu0 %v255
  %v480 = vpop.f32.mrf.mxu0
  %v481 = vadd.f32 %v99, %v480
  %v482 = vpop.f32.mrf.mxu0
  %v483 = vadd.f32 %v99, %v482
  %484 = vmatmul.bf16.gmra.mxu0 %v256
  %v485 = vpop.f32.mrf.mxu0
  %v486 = vadd.f32 %v99, %v485
  %v487 = vpop.f32.mrf.mxu0
  %v488 = vadd.f32 %v99, %v487
  %489 = vmatmul.bf16.gmra.mxu0 %v257
  %v490 = vpop.f32.mrf.mxu0
  %v491 = vadd.f32 %v99, %v490
  %v492 = vpop.f32.mrf.mxu0
  %v493 = vadd.f32 %v99, %v492
  %494 = vmatmul.bf16.gmra.mxu0 %v258
  %v495 = vpop.f32.mrf.mxu0
  %v496 = vadd.f32 %v99, %v495
  %v497 = vpop.f32.mrf.mxu0
  %v498 = vadd.f32 %v99, %v497
  %499 = vmatmul.bf16.gmra.mxu0 %v259
  %v500 = vpop.f32.mrf.mxu0
  %v501 = vadd.f32 %v99, %v500
  %v502 = vpop.f32.mrf.mxu0
  %v503 = vadd.f32 %v99, %v502
  %504 = vmatmul.bf16.gmra.mxu0 %v260
  %v505 = vpop.f32.mrf.mxu0
  %v506 = vadd.f32 %v99, %v505
  %v507 = vpop.f32.mrf.mxu0
  %v508 = vadd.f32 %v99, %v507
  %509 = vdwg.mxu0
  %v510 = vmax.f32 %v351, 0.0
  %v511 = vmax.f32 %v353, 0.0
  %v512 = vmax.f32 %v356, 0.0
  %v513 = vmax.f32 %v358, 0.0
  %v514 = vmax.f32 %v361, 0.0
  %v515 = vmax.f32 %v363, 0.0
  %v516 = vmax.f32 %v366, 0.0
  %v517 = vmax.f32 %v368, 0.0
  %v518 = vmax.f32 %v371, 0.0
  %v519 = vmax.f32 %v373, 0.0
  %v520 = vmax.f32 %v376, 0.0
  %v521 = vmax.f32 %v378, 0.0
  %v522 = vmax.f32 %v381, 0.0
  %v523 = vmax.f32 %v383, 0.0
  %v524 = vmax.f32 %v386, 0.0
  %v525 = vmax.f32 %v388, 0.0
  %v526 = vmax.f32 %v391, 0.0
  %v527 = vmax.f32 %v393, 0.0
  %v528 = vmax.f32 %v396, 0.0
  %v529 = vmax.f32 %v398, 0.0
  %v530 = vmax.f32 %v401, 0.0
  %v531 = vmax.f32 %v403, 0.0
  %v532 = vmax.f32 %v406, 0.0
  %v533 = vmax.f32 %v408, 0.0
  %v534 = vmax.f32 %v411, 0.0
  %v535 = vmax.f32 %v413, 0.0
  %v536 = vmax.f32 %v416, 0.0
  %v537 = vmax.f32 %v418, 0.0
  %v538 = vmax.f32 %v421, 0.0
  %v539 = vmax.f32 %v423, 0.0
  %v540 = vmax.f32 %v426, 0.0
  %v541 = vmax.f32 %v428, 0.0
  %v542 = vmax.f32 %v431, 0.0
  %v543 = vmax.f32 %v433, 0.0
  %v544 = vmax.f32 %v436, 0.0
  %v545 = vmax.f32 %v438, 0.0
  %v546 = vmax.f32 %v441, 0.0
  %v547 = vmax.f32 %v443, 0.0
  %v548 = vmax.f32 %v446, 0.0
  %v549 = vmax.f32 %v448, 0.0
  %v550 = vmax.f32 %v451, 0.0
  %v551 = vmax.f32 %v453, 0.0
  %v552 = vmax.f32 %v456, 0.0
  %v553 = vmax.f32 %v458, 0.0
  %v554 = vmax.f32 %v461, 0.0
  %v555 = vmax.f32 %v463, 0.0
  %v556 = vmax.f32 %v466, 0.0
  %v557 = vmax.f32 %v468, 0.0
  %v558 = vmax.f32 %v471, 0.0
  %v559 = vmax.f32 %v473, 0.0
  %v560 = vmax.f32 %v476, 0.0
  %v561 = vmax.f32 %v478, 0.0
  %v562 = vmax.f32 %v481, 0.0
  %v563 = vmax.f32 %v483, 0.0
  %v564 = vmax.f32 %v486, 0.0
  %v565 = vmax.f32 %v488, 0.0
  %v566 = vmax.f32 %v491, 0.0
  %v567 = vmax.f32 %v493, 0.0
  %v568 = vmax.f32 %v496, 0.0
  %v569 = vmax.f32 %v498, 0.0
  %v570 = vmax.f32 %v501, 0.0
  %v571 = vmax.f32 %v503, 0.0
  %v572 = vmax.f32 %v506, 0.0
  %v573 = vmax.f32 %v508, 0.0
  %v574 = vpack.c.bf16 %v510, %v510
  %v575 = vpack.c.bf16 %v511, %v511
  %v576 = vpack.c.bf16 %v512, %v512
  %v577 = vpack.c.bf16 %v513, %v513
  %v578 = vpack.c.bf16 %v514, %v514
  %v579 = vpack.c.bf16 %v515, %v515
  %v580 = vpack.c.bf16 %v516, %v516
  %v581 = vpack.c.bf16 %v517, %v517
  %v582 = vpack.c.bf16 %v518, %v518
  %v583 = vpack.c.bf16 %v519, %v519
  %v584 = vpack.c.bf16 %v520, %v520
  %v585 = vpack.c.bf16 %v521, %v521
  %v586 = vpack.c.bf16 %v522, %v522
  %v587 = vpack.c.bf16 %v523, %v523
  %v588 = vpack.c.bf16 %v524, %v524
  %v589 = vpack.c.bf16 %v525, %v525
  %v590 = vpack.c.bf16 %v526, %v526
  %v591 = vpack.c.bf16 %v527, %v527
  %v592 = vpack.c.bf16 %v528, %v528
  %v593 = vpack.c.bf16 %v529, %v529
  %v594 = vpack.c.bf16 %v530, %v530
  %v595 = vpack.c.bf16 %v531, %v531
  %v596 = vpack.c.bf16 %v532, %v532
  %v597 = vpack.c.bf16 %v533, %v533
  %v598 = vpack.c.bf16 %v534, %v534
  %v599 = vpack.c.bf16 %v535, %v535
  %v600 = vpack.c.bf16 %v536, %v536
  %v601 = vpack.c.bf16 %v537, %v537
  %v602 = vpack.c.bf16 %v538, %v538
  %v603 = vpack.c.bf16 %v539, %v539
  %v604 = vpack.c.bf16 %v540, %v540
  %v605 = vpack.c.bf16 %v541, %v541
  %v606 = vpack.c.bf16 %v542, %v542
  %v607 = vpack.c.bf16 %v543, %v543
  %v608 = vpack.c.bf16 %v544, %v544
  %v609 = vpack.c.bf16 %v545, %v545
  %v610 = vpack.c.bf16 %v546, %v546
  %v611 = vpack.c.bf16 %v547, %v547
  %v612 = vpack.c.bf16 %v548, %v548
  %v613 = vpack.c.bf16 %v549, %v549
  %v614 = vpack.c.bf16 %v550, %v550
  %v615 = vpack.c.bf16 %v551, %v551
  %v616 = vpack.c.bf16 %v552, %v552
  %v617 = vpack.c.bf16 %v553, %v553
  %v618 = vpack.c.bf16 %v554, %v554
  %v619 = vpack.c.bf16 %v555, %v555
  %v620 = vpack.c.bf16 %v556, %v556
  %v621 = vpack.c.bf16 %v557, %v557
  %v622 = vpack.c.bf16 %v558, %v558
  %v623 = vpack.c.bf16 %v559, %v559
  %v624 = vpack.c.bf16 %v560, %v560
  %v625 = vpack.c.bf16 %v561, %v561
  %v626 = vpack.c.bf16 %v562, %v562
  %v627 = vpack.c.bf16 %v563, %v563
  %v628 = vpack.c.bf16 %v564, %v564
  %v629 = vpack.c.bf16 %v565, %v565
  %v630 = vpack.c.bf16 %v566, %v566
  %v631 = vpack.c.bf16 %v567, %v567
  %v632 = vpack.c.bf16 %v568, %v568
  %v633 = vpack.c.bf16 %v569, %v569
  %v634 = vpack.c.bf16 %v570, %v570
  %v635 = vpack.c.bf16 %v571, %v571
  %v636 = vpack.c.bf16 %v572, %v572
  %v637 = vpack.c.bf16 %v573, %v573
  %638 = vst [vmem:[%s3] sm:$0xf] %v574
  %639 = vst [vmem:[%s3 + $0x4] sm:$0xf] %v575
  %640 = vst [vmem:[%s3 + $0x8] sm:$0xf] %v576
  %641 = vst [vmem:[%s3 + $0xc] sm:$0xf] %v577
  %642 = vst [vmem:[%s3 + $0x10] sm:$0xf] %v578
  %643 = vst [vmem:[%s3 + $0x14] sm:$0xf] %v579
  %644 = vst [vmem:[%s3 + $0x18] sm:$0xf] %v580
  %645 = vst [vmem:[%s3 + $0x1c] sm:$0xf] %v581
  %646 = vst [vmem:[%s3 + $0x20] sm:$0xf] %v582
  %647 = vst [vmem:[%s3 + $0x24] sm:$0xf] %v583
  %648 = vst [vmem:[%s3 + $0x28] sm:$0xf] %v584
  %649 = vst [vmem:[%s3 + $0x2c] sm:$0xf] %v585
  %650 = vst [vmem:[%s3 + $0x30] sm:$0xf] %v586
  %651 = vst [vmem:[%s3 + $0x34] sm:$0xf] %v587
  %652 = vst [vmem:[%s3 + $0x38] sm:$0xf] %v588
  %653 = vst [vmem:[%s3 + $0x3c] sm:$0xf] %v589
  %654 = vst [vmem:[%s3 + $0x40] sm:$0xf] %v590
  %655 = vst [vmem:[%s3 + $0x44] sm:$0xf] %v591
  %656 = vst [vmem:[%s3 + $0x48] sm:$0xf] %v592
  %657 = vst [vmem:[%s3 + $0x4c] sm:$0xf] %v593
  %658 = vst [vmem:[%s3 + $0x50] sm:$0xf] %v594
  %659 = vst [vmem:[%s3 + $0x54] sm:$0xf] %v595
  %660 = vst [vmem:[%s3 + $0x58] sm:$0xf] %v596
  %661 = vst [vmem:[%s3 + $0x5c] sm:$0xf] %v597
  %662 = vst [vmem:[%s3 + $0x60] sm:$0xf] %v598
  %663 = vst [vmem:[%s3 + $0x64] sm:$0xf] %v599
  %664 = vst [vmem:[%s3 + $0x68] sm:$0xf] %v600
  %665 = vst [vmem:[%s3 + $0x6c] sm:$0xf] %v601
  %666 = vst [vmem:[%s3 + $0x70] sm:$0xf] %v602
  %667 = vst [vmem:[%s3 + $0x74] sm:$0xf] %v603
  %668 = vst [vmem:[%s3 + $0x78] sm:$0xf] %v604
  %669 = vst [vmem:[%s3 + $0x7c] sm:$0xf] %v605
  %670 = vst [vmem:[%s3 + $0x80] sm:$0xf] %v606
  %671 = vst [vmem:[%s3 + $0x84] sm:$0xf] %v607
  %672 = vst [vmem:[%s3 + $0x88] sm:$0xf] %v608
  %673 = vst [vmem:[%s3 + $0x8c] sm:$0xf] %v609
  %674 = vst [vmem:[%s3 + $0x90] sm:$0xf] %v610
  %675 = vst [vmem:[%s3 + $0x94] sm:$0xf] %v611
  %676 = vst [vmem:[%s3 + $0x98] sm:$0xf] %v612
  %677 = vst [vmem:[%s3 + $0x9c] sm:$0xf] %v613
  %678 = vst [vmem:[%s3 + $0xa0] sm:$0xf] %v614
  %679 = vst [vmem:[%s3 + $0xa4] sm:$0xf] %v615
  %680 = vst [vmem:[%s3 + $0xa8] sm:$0xf] %v616
  %681 = vst [vmem:[%s3 + $0xac] sm:$0xf] %v617
  %682 = vst [vmem:[%s3 + $0xb0] sm:$0xf] %v618
  %683 = vst [vmem:[%s3 + $0xb4] sm:$0xf] %v619
  %684 = vst [vmem:[%s3 + $0xb8] sm:$0xf] %v620
  %685 = vst [vmem:[%s3 + $0xbc] sm:$0xf] %v621
  %686 = vst [vmem:[%s3 + $0xc0] sm:$0xf] %v622
  %687 = vst [vmem:[%s3 + $0xc4] sm:$0xf] %v623
  %688 = vst [vmem:[%s3 + $0xc8] sm:$0xf] %v624
  %689 = vst [vmem:[%s3 + $0xcc] sm:$0xf] %v625
  %690 = vst [vmem:[%s3 + $0xd0] sm:$0xf] %v626
  %691 = vst [vmem:[%s3 + $0xd4] sm:$0xf] %v627
  %692 = vst [vmem:[%s3 + $0xd8] sm:$0xf] %v628
  %693 = vst [vmem:[%s3 + $0xdc] sm:$0xf] %v629
  %694 = vst [vmem:[%s3 + $0xe0] sm:$0xf] %v630
  %695 = vst [vmem:[%s3 + $0xe4] sm:$0xf] %v631
  %696 = vst [vmem:[%s3 + $0xe8] sm:$0xf] %v632
  %697 = vst [vmem:[%s3 + $0xec] sm:$0xf] %v633
  %698 = vst [vmem:[%s3 + $0xf0] sm:$0xf] %v634
  %699 = vst [vmem:[%s3 + $0xf4] sm:$0xf] %v635
  %700 = vst [vmem:[%s3 + $0xf8] sm:$0xf] %v636
  %701 = vst [vmem:[%s3 + $0xfc] sm:$0xf] %v637
  %v702 = vadd.f32 %v510, %v511
  %v703 = vadd.f32 %v702, %v512
  %v704 = vadd.f32 %v703, %v513
  %v705 = vadd.f32 %v704, %v514
  %v706 = vadd.f32 %v705, %v515
  %v707 = vadd.f32 %v706, %v516
  %v708 = vadd.f32 %v707, %v517
  %v709 = vadd.f32 %v708, %v518
  %v710 = vadd.f32 %v709, %v519
  %v711 = vadd.f32 %v710, %v520
  %v712 = vadd.f32 %v711, %v521
  %v713 = vadd.f32 %v712, %v522
  %v714 = vadd.f32 %v713, %v523
  %v715 = vadd.f32 %v714, %v524
  %v716 = vadd.f32 %v715, %v525
  %v717 = vadd.f32 %v716, %v526
  %v718 = vadd.f32 %v717, %v527
  %v719 = vadd.f32 %v718, %v528
  %v720 = vadd.f32 %v719, %v529
  %v721 = vadd.f32 %v720, %v530
  %v722 = vadd.f32 %v721, %v531
  %v723 = vadd.f32 %v722, %v532
  %v724 = vadd.f32 %v723, %v533
  %v725 = vadd.f32 %v724, %v534
  %v726 = vadd.f32 %v725, %v535
  %v727 = vadd.f32 %v726, %v536
  %v728 = vadd.f32 %v727, %v537
  %v729 = vadd.f32 %v728, %v538
  %v730 = vadd.f32 %v729, %v539
  %v731 = vadd.f32 %v730, %v540
  %v732 = vadd.f32 %v731, %v541
  %v733 = vadd.f32 %v732, %v542
  %v734 = vadd.f32 %v733, %v543
  %v735 = vadd.f32 %v734, %v544
  %v736 = vadd.f32 %v735, %v545
  %v737 = vadd.f32 %v736, %v546
  %v738 = vadd.f32 %v737, %v547
  %v739 = vadd.f32 %v738, %v548
  %v740 = vadd.f32 %v739, %v549
  %v741 = vadd.f32 %v740, %v550
  %v742 = vadd.f32 %v741, %v551
  %v743 = vadd.f32 %v742, %v552
  %v744 = vadd.f32 %v743, %v553
  %v745 = vadd.f32 %v744, %v554
  %v746 = vadd.f32 %v745, %v555
  %v747 = vadd.f32 %v746, %v556
  %v748 = vadd.f32 %v747, %v557
  %v749 = vadd.f32 %v748, %v558
  %v750 = vadd.f32 %v749, %v559
  %v751 = vadd.f32 %v750, %v560
  %v752 = vadd.f32 %v751, %v561
  %v753 = vadd.f32 %v752, %v562
  %v754 = vadd.f32 %v753, %v563
  %v755 = vadd.f32 %v754, %v564
  %v756 = vadd.f32 %v755, %v565
  %v757 = vadd.f32 %v756, %v566
  %v758 = vadd.f32 %v757, %v567
  %v759 = vadd.f32 %v758, %v568
  %v760 = vadd.f32 %v759, %v569
  %v761 = vadd.f32 %v760, %v570
  %v762 = vadd.f32 %v761, %v571
  %v763 = vadd.f32 %v762, %v572
  %v764 = vadd.f32 %v763, %v573
  %v765 = vrot.slane %v764, 4
  %v766 = vadd.f32 %v764, %v765
  %v767 = vrot.slane %v766, 2
  %v768 = vadd.f32 %v766, %v767
  %v769 = vrot.slane %v768, 1
  %v770 = vadd.f32 %v768, %v769
  %v771 = vmul.f32 %v510, %v510
  %v772 = vmul.f32 %v511, %v511
  %v773 = vmul.f32 %v512, %v512
  %v774 = vmul.f32 %v513, %v513
  %v775 = vmul.f32 %v514, %v514
  %v776 = vmul.f32 %v515, %v515
  %v777 = vmul.f32 %v516, %v516
  %v778 = vmul.f32 %v517, %v517
  %v779 = vmul.f32 %v518, %v518
  %v780 = vmul.f32 %v519, %v519
  %v781 = vmul.f32 %v520, %v520
  %v782 = vmul.f32 %v521, %v521
  %v783 = vmul.f32 %v522, %v522
  %v784 = vmul.f32 %v523, %v523
  %v785 = vmul.f32 %v524, %v524
  %v786 = vmul.f32 %v525, %v525
  %v787 = vmul.f32 %v526, %v526
  %v788 = vmul.f32 %v527, %v527
  %v789 = vmul.f32 %v528, %v528
  %v790 = vmul.f32 %v529, %v529
  %v791 = vmul.f32 %v530, %v530
  %v792 = vmul.f32 %v531, %v531
  %v793 = vmul.f32 %v532, %v532
  %v794 = vmul.f32 %v533, %v533
  %v795 = vmul.f32 %v534, %v534
  %v796 = vmul.f32 %v535, %v535
  %v797 = vmul.f32 %v536, %v536
  %v798 = vmul.f32 %v537, %v537
  %v799 = vmul.f32 %v538, %v538
  %v800 = vmul.f32 %v539, %v539
  %v801 = vmul.f32 %v540, %v540
  %v802 = vmul.f32 %v541, %v541
  %v803 = vmul.f32 %v542, %v542
  %v804 = vmul.f32 %v543, %v543
  %v805 = vmul.f32 %v544, %v544
  %v806 = vmul.f32 %v545, %v545
  %v807 = vmul.f32 %v546, %v546
  %v808 = vmul.f32 %v547, %v547
  %v809 = vmul.f32 %v548, %v548
  %v810 = vmul.f32 %v549, %v549
  %v811 = vmul.f32 %v550, %v550
  %v812 = vmul.f32 %v551, %v551
  %v813 = vmul.f32 %v552, %v552
  %v814 = vmul.f32 %v553, %v553
  %v815 = vmul.f32 %v554, %v554
  %v816 = vmul.f32 %v555, %v555
  %v817 = vmul.f32 %v556, %v556
  %v818 = vmul.f32 %v557, %v557
  %v819 = vmul.f32 %v558, %v558
  %v820 = vmul.f32 %v559, %v559
  %v821 = vmul.f32 %v560, %v560
  %v822 = vmul.f32 %v561, %v561
  %v823 = vmul.f32 %v562, %v562
  %v824 = vmul.f32 %v563, %v563
  %v825 = vmul.f32 %v564, %v564
  %v826 = vmul.f32 %v565, %v565
  %v827 = vmul.f32 %v566, %v566
  %v828 = vmul.f32 %v567, %v567
  %v829 = vmul.f32 %v568, %v568
  %v830 = vmul.f32 %v569, %v569
  %v831 = vmul.f32 %v570, %v570
  %v832 = vmul.f32 %v571, %v571
  %v833 = vmul.f32 %v572, %v572
  %v834 = vmul.f32 %v573, %v573
  %v835 = vadd.f32 %v771, %v772
  %v836 = vadd.f32 %v835, %v773
  %v837 = vadd.f32 %v836, %v774
  %v838 = vadd.f32 %v837, %v775
  %v839 = vadd.f32 %v838, %v776
  %v840 = vadd.f32 %v839, %v777
  %v841 = vadd.f32 %v840, %v778
  %v842 = vadd.f32 %v841, %v779
  %v843 = vadd.f32 %v842, %v780
  %v844 = vadd.f32 %v843, %v781
  %v845 = vadd.f32 %v844, %v782
  %v846 = vadd.f32 %v845, %v783
  %v847 = vadd.f32 %v846, %v784
  %v848 = vadd.f32 %v847, %v785
  %v849 = vadd.f32 %v848, %v786
  %v850 = vadd.f32 %v849, %v787
  %v851 = vadd.f32 %v850, %v788
  %v852 = vadd.f32 %v851, %v789
  %v853 = vadd.f32 %v852, %v790
  %v854 = vadd.f32 %v853, %v791
  %v855 = vadd.f32 %v854, %v792
  %v856 = vadd.f32 %v855, %v793
  %v857 = vadd.f32 %v856, %v794
  %v858 = vadd.f32 %v857, %v795
  %v859 = vadd.f32 %v858, %v796
  %v860 = vadd.f32 %v859, %v797
  %v861 = vadd.f32 %v860, %v798
  %v862 = vadd.f32 %v861, %v799
  %v863 = vadd.f32 %v862, %v800
  %v864 = vadd.f32 %v863, %v801
  %v865 = vadd.f32 %v864, %v802
  %v866 = vadd.f32 %v865, %v803
  %v867 = vadd.f32 %v866, %v804
  %v868 = vadd.f32 %v867, %v805
  %v869 = vadd.f32 %v868, %v806
  %v870 = vadd.f32 %v869, %v807
  %v871 = vadd.f32 %v870, %v808
  %v872 = vadd.f32 %v871, %v809
  %v873 = vadd.f32 %v872, %v810
  %v874 = vadd.f32 %v873, %v811
  %v875 = vadd.f32 %v874, %v812
  %v876 = vadd.f32 %v875, %v813
  %v877 = vadd.f32 %v876, %v814
  %v878 = vadd.f32 %v877, %v815
  %v879 = vadd.f32 %v878, %v816
  %v880 = vadd.f32 %v879, %v817
  %v881 = vadd.f32 %v880, %v818
  %v882 = vadd.f32 %v881, %v819
  %v883 = vadd.f32 %v882, %v820
  %v884 = vadd.f32 %v883, %v821
  %v885 = vadd.f32 %v884, %v822
  %v886 = vadd.f32 %v885, %v823
  %v887 = vadd.f32 %v886, %v824
  %v888 = vadd.f32 %v887, %v825
  %v889 = vadd.f32 %v888, %v826
  %v890 = vadd.f32 %v889, %v827
  %v891 = vadd.f32 %v890, %v828
  %v892 = vadd.f32 %v891, %v829
  %v893 = vadd.f32 %v892, %v830
  %v894 = vadd.f32 %v893, %v831
  %v895 = vadd.f32 %v894, %v832
  %v896 = vadd.f32 %v895, %v833
  %v897 = vadd.f32 %v896, %v834
  %v898 = vrot.slane %v897, 4
  %v899 = vadd.f32 %v897, %v898
  %v900 = vrot.slane %v899, 2
  %v901 = vadd.f32 %v899, %v900
  %v902 = vrot.slane %v901, 1
  %v903 = vadd.f32 %v901, %v902
  %v904 = vlaneseq
  %v905 = vshrl.u32 %v904, 7
  %vm906 = vcmp.eq.s32.totalorder %v905, 0
  %v907 = vsel %vm906, %v770, 0.0
  %908 = vst [vmem:[%s4] sm:$0xff] %v907
  %v909 = vsel %vm906, %v903, 0.0
  %910 = vst [vmem:[%s5] sm:$0xff] %v909
  // Predicated region
  $region14: #{double_conv_forward.4} parent=0 // pred_check
    _
  $region15: #{double_conv_forward.4} parent=0 // pred_check_branch
    %912 = sbr.rel (0) target = $region17
  $region16: #{double_conv_forward.4} parent=0 // pred_region
    _
  $region17: #{double_conv_forward.4} parent=0 // pred_fallthru
    _
  // Predicated region
  $region18: #{double_conv_forward.4} parent=0 // pred_check
    _
  $region19: #{double_conv_forward.4} parent=0 // pred_check_branch
    %914 = sbr.rel (0) target = $region21
  $region20: #{double_conv_forward.4} parent=0 // pred_region
    _
  $region21: #{double_conv_forward.4} parent=0 // pred_fallthru
    _
  // Predicated region
  $region22: #{double_conv_forward.4} parent=0 // pred_check
    _
  $region23: #{double_conv_forward.4} parent=0 // pred_check_branch
    %916 = sbr.rel (0) target = $region25
  $region24: #{double_conv_forward.4} parent=0 // pred_region
    _
  $region25: #{double_conv_forward.4} parent=0 // pred_fallthru
    _
  // Predicated region
  $region26: #{double_conv_forward.4} parent=0 // pred_check
    _
  $region27: #{double_conv_forward.4} parent=0 // pred_check_branch
    %918 = sbr.rel (0) target = $region29
  $region28: #{double_conv_forward.4} parent=0 // pred_region
    _
  $region29: #{double_conv_forward.4} parent=0 // pred_fallthru
    _
  // Predicated region
  $region30: #{double_conv_forward.4} parent=0 // pred_check
    _
  $region31: #{double_conv_forward.4} parent=0 // pred_check_branch
    %920 = sbr.rel (0) target = $region33
  $region32: #{double_conv_forward.4} parent=0 // pred_region
    _
  $region33: #{double_conv_forward.4} parent=0 // pred_fallthru
    _
  // Predicated region
  $region34: #{double_conv_forward.4} parent=0 // pred_check
    _
  $region35: #{double_conv_forward.4} parent=0 // pred_check_branch
    %922 = sbr.rel (0) target = $region37
  $region36: #{double_conv_forward.4} parent=0 // pred_region
    _
  $region37: #{double_conv_forward.4} parent=0 // pred_fallthru
    _

</llo_original>
